<compile_context>
chip_gen: v7x
topology: tpu7x:2x2x1
jax: 0.10.0
libtpu: 0.0.40
codegen_flags: <defaults>
</compile_context>

<pallas_src>
import jax
import jax.numpy as jnp
from jax.experimental import pallas as pl
from jax.experimental.pallas import tpu as pltpu


def _cat_mm_kernel(x_ref, y_ref, z_ref, o_ref):
    n1 = y_ref.shape[1]
    x = x_ref[...]
    # One MXU matmul per distinct product (v2 == v1, so it is not recomputed).
    v1 = jnp.dot(x, y_ref[...], preferred_element_type=jnp.float32).astype(o_ref.dtype)
    v3 = jnp.dot(x, z_ref[...], preferred_element_type=jnp.float32).astype(o_ref.dtype)
    # Concatenation expressed as static-sliced stores into the output block —
    # no in-kernel jnp.concatenate, no wrapper-side slab.
    o_ref[:, :n1] = v1
    o_ref[:, n1:2 * n1] = v1          # v2 is a duplicate store, not a recompute
    o_ref[:, 2 * n1:] = v3


def cat_mm(x, y, z):
    M, K = x.shape
    _, N1 = y.shape
    _, N2 = z.shape
    N_out = 2 * N1 + N2
    out_shape = jax.ShapeDtypeStruct((M, N_out), x.dtype)

    itemsize = jnp.dtype(x.dtype).itemsize
    cost = pl.CostEstimate(
        flops=2 * M * K * (N1 + N2),          # actual MXU work (y used once)
        transcendentals=0,
        bytes_accessed=(x.size + y.size + z.size + M * N_out) * itemsize,
    )

    return pl.pallas_call(
        _cat_mm_kernel,
        out_shape=out_shape,
        in_specs=[
            pl.BlockSpec(memory_space=pltpu.VMEM),
            pl.BlockSpec(memory_space=pltpu.VMEM),
            pl.BlockSpec(memory_space=pltpu.VMEM),
        ],
        out_specs=pl.BlockSpec(memory_space=pltpu.VMEM),
        cost_estimate=cost,
    )(x, y, z)


if __name__ == "__main__":
    key = jax.random.PRNGKey(0)
    kx, ky, kz = jax.random.split(key, 3)
    # Shapes consistent with the module: x (2,2), y (2,2), z (2,2).
    x = jax.random.normal(kx, (2, 2), dtype=jnp.float32)
    y = jax.random.normal(ky, (2, 2), dtype=jnp.float32)
    z = jax.random.normal(kz, (2, 2), dtype=jnp.float32)

    out = jax.block_until_ready(cat_mm(x, y, z))

    # Reference in plain JAX (matches torch semantics: v2 == v1).
    v1 = x @ y
    v3 = x @ z
    ref = jnp.concatenate([v1, v1, v3], axis=1)
    assert out.shape == (2, 6), out.shape
    assert jnp.allclose(out, ref, atol=1e-5, rtol=1e-5)

    print("KERNEL_OK")
</pallas_src>

<mosaic_0001>
module attributes {stable_mosaic.version = 11 : i64} {
  func.func @_cat_mm_kernel(%arg0: memref<2x2xf32, #tpu.memory_space<vmem>>, %arg1: memref<2x2xf32, #tpu.memory_space<vmem>>, %arg2: memref<2x2xf32, #tpu.memory_space<vmem>>, %arg3: memref<2x6xf32, #tpu.memory_space<vmem>>) attributes {dimension_semantics = [], scalar_prefetch = 0 : i64, scratch_operands = 0 : i64, tpu.core_type = #tpu.core_type<tc>} {
    %c0 = arith.constant 0 : index
    %c0_0 = arith.constant 0 : index
    %0 = vector.load %arg0[%c0, %c0_0] : memref<2x2xf32, #tpu.memory_space<vmem>>, vector<2x2xf32>
    %c0_1 = arith.constant 0 : index
    %c0_2 = arith.constant 0 : index
    %1 = vector.load %arg1[%c0_1, %c0_2] : memref<2x2xf32, #tpu.memory_space<vmem>>, vector<2x2xf32>
    %cst = arith.constant dense<0.000000e+00> : vector<2x2xf32>
    %2 = tpu.matmul %0, %1, %cst {dimension_numbers = #tpu.dot_dimension_numbers<[1], [0], [0], [1], [0, 0, 1, 1], [], []>} : vector<2x2xf32>, vector<2x2xf32>, vector<2x2xf32> -> vector<2x2xf32>
    %c0_3 = arith.constant 0 : index
    %c0_4 = arith.constant 0 : index
    %3 = vector.load %arg2[%c0_3, %c0_4] : memref<2x2xf32, #tpu.memory_space<vmem>>, vector<2x2xf32>
    %cst_5 = arith.constant dense<0.000000e+00> : vector<2x2xf32>
    %4 = tpu.matmul %0, %3, %cst_5 {dimension_numbers = #tpu.dot_dimension_numbers<[1], [0], [0], [1], [0, 0, 1, 1], [], []>} : vector<2x2xf32>, vector<2x2xf32>, vector<2x2xf32> -> vector<2x2xf32>
    %c0_6 = arith.constant 0 : index
    %c0_7 = arith.constant 0 : index
    %5 = vector.load %arg3[%c0_6, %c0_7] : memref<2x6xf32, #tpu.memory_space<vmem>>, vector<2x2xf32>
    tpu.vector_store %arg3[%c0_6, %c0_7], %2 {strides = array<i32>} : memref<2x6xf32, #tpu.memory_space<vmem>>, vector<2x2xf32>,
    %c0_8 = arith.constant 0 : index
    %c2 = arith.constant 2 : index
    %6 = vector.load %arg3[%c0_8, %c2] : memref<2x6xf32, #tpu.memory_space<vmem>>, vector<2x2xf32>
    tpu.vector_store %arg3[%c0_8, %c2], %2 {strides = array<i32>} : memref<2x6xf32, #tpu.memory_space<vmem>>, vector<2x2xf32>,
    %c0_9 = arith.constant 0 : index
    %c4 = arith.constant 4 : index
    %7 = vector.load %arg3[%c0_9, %c4] : memref<2x6xf32, #tpu.memory_space<vmem>>, vector<2x2xf32>
    tpu.vector_store %arg3[%c0_9, %c4], %4 {strides = array<i32>} : memref<2x6xf32, #tpu.memory_space<vmem>>, vector<2x2xf32>,
    return
  }
}

</mosaic_0001>

<llo_original>
// kernel: tpu_custom_call.1
$region0: #{tpu_custom_call.1}
  #allocation0 [shape = 'u32[]', space=smem, size = 0x4, offset = 0x4, fixed_abs, tag = 'smem constant byte address 0x4 - core index']
  #allocation1 [shape = 'u32[144,128]{1,0:T(1,128)}', space=vmem, size = 0x12000, scoped, tag = 'internal scratch']
  %s0 = inlined_call_operand.hbm [shape: f32[2,2], index: 0, kind: input, shape index: {}]
  %s1 = inlined_call_operand.vmem [shape: f32[2,2], index: 1, kind: input, shape index: {}]
  %s2 = inlined_call_operand.vmem [shape: f32[2,2], index: 2, kind: input, shape index: {}]
  %s3 = inlined_call_operand.hbm [shape: f32[2,6], index: 3, kind: output, shape index: {}]
  %s4 = sld [smem:[#allocation0]]
  $region26: #{tpu_custom_call.1} parent=0
    _
  %s6 = ssub.s32 1, %s4
  %s7 = scalar_select 0, %s6, %s4
  $region1: #{tpu_custom_call.1} parent=0
    #allocation2 [shape = 'u8[1024]{0}', space=vmem, size = 0x400, scoped, tag = 'input window, operand 0, single buffered']
    #allocation3 [shape = 's32[1]{0}', space=sflag, size = 0x4, scoped, tag = 'scoped memory for tpu_custom_call.1']
    #allocation4 [shape = 's32[1]{0}', space=sflag, size = 0x4, scoped, tag = 'scoped memory for tpu_custom_call.1']
    #allocation5 [shape = 'u8[1024]{0}', space=vmem, size = 0x400, scoped, tag = 'output window, operand 0, single buffered']
    %8 = vsyncpa [#allocation3], 0
    %9 = vsyncpa [#allocation4], 0
    // Predicated region
    $region2: #{tpu_custom_call.1} parent=1 // pred_check
      _
    $region3: #{tpu_custom_call.1} parent=1 // pred_check_branch
      %11 = sbr.rel (0) target = $region5
    $region4: #{tpu_custom_call.1} parent=1 // pred_region
      %s13 = ssub.s32 32, 32
      %14 = vsyncadd [#allocation3], %s13
      %s16 = sshll.u32 [#allocation2], 4
      %s17 = int_to_ptr.vmem [resolvable:$true] %s16
      %19 = dma.hbm_to_vmem [thread:$0]  %s0, 32, %s17, [#allocation3]
    $region5: #{tpu_custom_call.1} parent=1 // pred_fallthru
      _
    // Predicated region
    $region6: #{tpu_custom_call.1} parent=1 // pred_check
      _
    $region7: #{tpu_custom_call.1} parent=1 // pred_check_branch
      %21 = sbr.rel (0) target = $region9
    $region8: #{tpu_custom_call.1} parent=1 // pred_region
      _
    $region9: #{tpu_custom_call.1} parent=1 // pred_fallthru
      _
    // Predicated region
    $region10: #{tpu_custom_call.1} parent=1 // pred_check
      _
    $region11: #{tpu_custom_call.1} parent=1 // pred_check_branch
      %23 = sbr.rel (0) target = $region13
    $region12: #{tpu_custom_call.1} parent=1 // pred_region
      _
    $region13: #{tpu_custom_call.1} parent=1 // pred_fallthru
      _
    // Predicated region
    $region14: #{tpu_custom_call.1} parent=1 // pred_check
      _
    $region15: #{tpu_custom_call.1} parent=1 // pred_check_branch
      %25 = sbr.rel (0) target = $region17
    $region16: #{tpu_custom_call.1} parent=1 // pred_region
      %26 = dma.done [#allocation3], 32
    $region17: #{tpu_custom_call.1} parent=1 // pred_fallthru
      _
    %v27 = vld [vmem:[#allocation2] sm:$0x3]
    %v28 = vld [vmem:[%s1] sm:$0x3]
    %vm29 = vcmask 15360
    %v31 = vsel %vm29, %v27, 0
    %vm33 = vcmask 1041408
    %v35 = vsel %vm33, %v28, 0
    %37 = vmatprep.subr.mxu0 0.0
    %38 = vmatpush1.msra.mxu0 %v35
    %39 = vmatprep.subr.mxu0 0.0
    %40 = vmatpush1.msra.mxu0 0.0
    %41 = vmatprep.subr.mxu0 0.0
    %42 = vmatpush1.msra.mxu0 0.0
    %43 = vmatprep.subr.mxu0 0.0
    %44 = vmatpush1.msra.mxu0 0.0
    %45 = vmatprep.subr.mxu0 0.0
    %46 = vmatpush1.msra.mxu0 0.0
    %47 = vmatprep.subr.mxu0 0.0
    %48 = vmatpush1.msra.mxu0 0.0
    %49 = vmatprep.subr.mxu0 0.0
    %50 = vmatpush1.msra.mxu0 0.0
    %51 = vmatprep.subr.mxu0 0.0
    %52 = vmatpush1.msra.mxu0 0.0
    %53 = vmatprep.subr.mxu0 0.0
    %54 = vmatpush1.msra.mxu0 0.0
    %55 = vmatprep.subr.mxu0 0.0
    %56 = vmatpush1.msra.mxu0 0.0
    %57 = vmatprep.subr.mxu0 0.0
    %58 = vmatpush1.msra.mxu0 0.0
    %59 = vmatprep.subr.mxu0 0.0
    %60 = vmatpush1.msra.mxu0 0.0
    %61 = vmatprep.subr.mxu0 0.0
    %62 = vmatpush1.msra.mxu0 0.0
    %63 = vmatprep.subr.mxu0 0.0
    %64 = vmatpush1.msra.mxu0 0.0
    %65 = vmatprep.subr.mxu0 0.0
    %66 = vmatpush1.msra.mxu0 0.0
    %67 = vmatprep.subr.mxu0 0.0
    %68 = vmatpush1.msra.mxu0 0.0
    %69 = vmatprep.subr.mxu0 0.0
    %70 = vmatpush1.msra.mxu0 0.0
    %71 = vmatprep.subr.mxu0 0.0
    %72 = vmatpush1.msra.mxu0 0.0
    %73 = vmatprep.subr.mxu0 0.0
    %74 = vmatpush1.msra.mxu0 0.0
    %75 = vmatprep.subr.mxu0 0.0
    %76 = vmatpush1.msra.mxu0 0.0
    %77 = vmatprep.subr.mxu0 0.0
    %78 = vmatpush1.msra.mxu0 0.0
    %79 = vmatprep.subr.mxu0 0.0
    %80 = vmatpush1.msra.mxu0 0.0
    %81 = vmatprep.subr.mxu0 0.0
    %82 = vmatpush1.msra.mxu0 0.0
    %83 = vmatprep.subr.mxu0 0.0
    %84 = vmatpush1.msra.mxu0 0.0
    %85 = vmatprep.subr.mxu0 0.0
    %86 = vmatpush1.msra.mxu0 0.0
    %87 = vmatprep.subr.mxu0 0.0
    %88 = vmatpush1.msra.mxu0 0.0
    %89 = vmatprep.subr.mxu0 0.0
    %90 = vmatpush1.msra.mxu0 0.0
    %91 = vmatprep.subr.mxu0 0.0
    %92 = vmatpush1.msra.mxu0 0.0
    %93 = vmatprep.subr.mxu0 0.0
    %94 = vmatpush1.msra.mxu0 0.0
    %95 = vmatprep.subr.mxu0 0.0
    %96 = vmatpush1.msra.mxu0 0.0
    %97 = vmatprep.subr.mxu0 0.0
    %98 = vmatpush1.msra.mxu0 0.0
    %99 = vmatprep.subr.mxu0 0.0
    %100 = vmatpush1.msra.mxu0 0.0
    %101 = vmatprep.mubr.f32.mxu0 0.0
    %102 = vmatmul.mubr.f32.gmra.mrb[0].mxu0 %v31
    %v103 = vpop.f32.mrb[0].mxu0
    %v104 = vadd.f32 0.0, %v103
    %v105 = vpop.f32.mrb[0].mxu0
    %106 = vdwg.mxu0
    %v107 = vld [vmem:[%s2] sm:$0x3]
    %v109 = vsel %vm33, %v107, 0
    %111 = vmatprep.subr.mxu0 0.0
    %112 = vmatpush1.msra.mxu0 %v109
    %113 = vmatprep.subr.mxu0 0.0
    %114 = vmatpush1.msra.mxu0 0.0
    %115 = vmatprep.subr.mxu0 0.0
    %116 = vmatpush1.msra.mxu0 0.0
    %117 = vmatprep.subr.mxu0 0.0
    %118 = vmatpush1.msra.mxu0 0.0
    %119 = vmatprep.subr.mxu0 0.0
    %120 = vmatpush1.msra.mxu0 0.0
    %121 = vmatprep.subr.mxu0 0.0
    %122 = vmatpush1.msra.mxu0 0.0
    %123 = vmatprep.subr.mxu0 0.0
    %124 = vmatpush1.msra.mxu0 0.0
    %125 = vmatprep.subr.mxu0 0.0
    %126 = vmatpush1.msra.mxu0 0.0
    %127 = vmatprep.subr.mxu0 0.0
    %128 = vmatpush1.msra.mxu0 0.0
    %129 = vmatprep.subr.mxu0 0.0
    %130 = vmatpush1.msra.mxu0 0.0
    %131 = vmatprep.subr.mxu0 0.0
    %132 = vmatpush1.msra.mxu0 0.0
    %133 = vmatprep.subr.mxu0 0.0
    %134 = vmatpush1.msra.mxu0 0.0
    %135 = vmatprep.subr.mxu0 0.0
    %136 = vmatpush1.msra.mxu0 0.0
    %137 = vmatprep.subr.mxu0 0.0
    %138 = vmatpush1.msra.mxu0 0.0
    %139 = vmatprep.subr.mxu0 0.0
    %140 = vmatpush1.msra.mxu0 0.0
    %141 = vmatprep.subr.mxu0 0.0
    %142 = vmatpush1.msra.mxu0 0.0
    %143 = vmatprep.subr.mxu0 0.0
    %144 = vmatpush1.msra.mxu0 0.0
    %145 = vmatprep.subr.mxu0 0.0
    %146 = vmatpush1.msra.mxu0 0.0
    %147 = vmatprep.subr.mxu0 0.0
    %148 = vmatpush1.msra.mxu0 0.0
    %149 = vmatprep.subr.mxu0 0.0
    %150 = vmatpush1.msra.mxu0 0.0
    %151 = vmatprep.subr.mxu0 0.0
    %152 = vmatpush1.msra.mxu0 0.0
    %153 = vmatprep.subr.mxu0 0.0
    %154 = vmatpush1.msra.mxu0 0.0
    %155 = vmatprep.subr.mxu0 0.0
    %156 = vmatpush1.msra.mxu0 0.0
    %157 = vmatprep.subr.mxu0 0.0
    %158 = vmatpush1.msra.mxu0 0.0
    %159 = vmatprep.subr.mxu0 0.0
    %160 = vmatpush1.msra.mxu0 0.0
    %161 = vmatprep.subr.mxu0 0.0
    %162 = vmatpush1.msra.mxu0 0.0
    %163 = vmatprep.subr.mxu0 0.0
    %164 = vmatpush1.msra.mxu0 0.0
    %165 = vmatprep.subr.mxu0 0.0
    %166 = vmatpush1.msra.mxu0 0.0
    %167 = vmatprep.subr.mxu0 0.0
    %168 = vmatpush1.msra.mxu0 0.0
    %169 = vmatprep.subr.mxu0 0.0
    %170 = vmatpush1.msra.mxu0 0.0
    %171 = vmatprep.subr.mxu0 0.0
    %172 = vmatpush1.msra.mxu0 0.0
    %173 = vmatprep.subr.mxu0 0.0
    %174 = vmatpush1.msra.mxu0 0.0
    %175 = vmatprep.mubr.f32.mxu0 0.0
    %176 = vmatmul.mubr.f32.gmra.mrb[0].mxu0 %v31
    %v177 = vpop.f32.mrb[0].mxu0
    %v178 = vadd.f32 0.0, %v177
    %v179 = vpop.f32.mrb[0].mxu0
    %180 = vdwg.mxu0
    %vm181 = vcmask 9216
    %182 = vst.msk [vmem:[#allocation5] sm:$0x3] %vm181, %v104
    %184 = vrot.lane.b32.xlu0 %v104, 2
    %v185 = vpop.permute.xlu0 %184
    %vm187 = vcmask 25616
    %188 = vst.msk [vmem:[#allocation5] sm:$0x3] %vm187, %v185
    %190 = vrot.lane.b32.xlu0 %v178, 4
    %v191 = vpop.permute.xlu0 %190
    %vm193 = vcmask 42016
    %194 = vst.msk [vmem:[#allocation5] sm:$0x3] %vm193, %v191
    // Predicated region
    $region18: #{tpu_custom_call.1} parent=1 // pred_check
      _
    $region19: #{tpu_custom_call.1} parent=1 // pred_check_branch
      %196 = sbr.rel (0) target = $region21
    $region20: #{tpu_custom_call.1} parent=1 // pred_region
      %s198 = ssub.s32 32, 32
      %199 = vsyncadd [#allocation4], %s198
      %s201 = sshll.u32 [#allocation5], 4
      %s202 = int_to_ptr.vmem [resolvable:$true] %s201
      %204 = dma.vmem_to_hbm [thread:$0]  %s202, 32, %s3, [#allocation4]
    $region21: #{tpu_custom_call.1} parent=1 // pred_fallthru
      _
    // Predicated region
    $region22: #{tpu_custom_call.1} parent=1 // pred_check
      _
    $region23: #{tpu_custom_call.1} parent=1 // pred_check_branch
      %206 = sbr.rel (0) target = $region25
    $region24: #{tpu_custom_call.1} parent=1 // pred_region
      %207 = dma.done [#allocation4], 32
    $region25: #{tpu_custom_call.1} parent=1 // pred_fallthru
      _
    %208 = vsyncpa [#allocation3], 1
    %209 = vsyncpa [#allocation4], 1

</llo_original>
